<compile_context>
chip_gen: v7x
topology: tpu7x:2x2x1
jax: 0.10.0
libtpu: 0.0.40
codegen_flags: <defaults>
</compile_context>

<pallas_src>
import math

import jax
import jax.numpy as jnp
from jax.experimental import pallas as pl
from jax.experimental.pallas import tpu as pltpu


def _round_up(x, m):
    return (x + m - 1) // m * m


def _cdiv(a, b):
    return (a + b - 1) // b


def _fused_gru_kernel(x_ref, h_ref, wih0_ref, wih_ref, whh_ref, bias_ref,
                      out_ref, cur_ref, gi_ref):
    """Fused multi-layer GRUCell step.

    Grid: (batch_blocks, num_layers). Per iteration the refs are:
      x_ref    : (TB, K0_pad)            padded external input (layer-0 only)
      h_ref    : (1, TB, H_pad)          previous hidden state of this layer
      wih0_ref : (K0_pad, 3*H_pad)       layer-0 W_ih (pre-transposed, gate-blocked)
      wih_ref  : (1, H_pad, 3*H_pad)     W_ih of layer l (l>=1)
      whh_ref  : (1, H_pad, 3*H_pad)     W_hh of layer l
      bias_ref : (1, 2, 3*H_pad)         row 0 = b_ih, row 1 = b_hh (f32)
      out_ref  : (1, TB, H_pad)          h' of this layer
      cur_ref  : (TB, H_pad)   VMEM scratch — running layer input (weight dtype)
      gi_ref   : (TB, 3*H_pad) VMEM scratch — input-hidden gate pre-activations
    """
    layer = pl.program_id(1)
    H = out_ref.shape[-1]        # H_pad (multiple of 128)

    # Input-hidden matmul: layer 0 reads the external input with its own W_ih;
    # later layers read the hidden-sized carry left in VMEM by the previous layer.
    @pl.when(layer == 0)
    def _():
        w0 = wih0_ref[...]
        gi_ref[...] = jnp.dot(x_ref[...].astype(w0.dtype), w0,
                              preferred_element_type=jnp.float32)

    @pl.when(layer != 0)
    def _():
        gi_ref[...] = jnp.dot(cur_ref[...], wih_ref[0],
                              preferred_element_type=jnp.float32)

    h_prev = h_ref[0]                                 # (TB, H_pad) f32
    whh = whh_ref[0]

    gi = gi_ref[...] + bias_ref[0, 0:1, :]            # (TB, 3*H_pad)
    gh = jnp.dot(h_prev.astype(whh.dtype), whh,
                 preferred_element_type=jnp.float32) + bias_ref[0, 1:2, :]

    # Gate order r | z | n, each H_pad wide (lane-aligned slices).
    r = jax.nn.sigmoid(gi[:, 0:H] + gh[:, 0:H])
    z = jax.nn.sigmoid(gi[:, H:2 * H] + gh[:, H:2 * H])
    n = jnp.tanh(gi[:, 2 * H:3 * H] + r * gh[:, 2 * H:3 * H])

    # h' = (1 - z) * n + z * h  ==  n + z * (h - n)
    h_new = n + z * (h_prev - n)
    out_ref[0] = h_new.astype(out_ref.dtype)

    # Feed the next layer (skip the store on the last layer — it's never read).
    @pl.when(layer + 1 < pl.num_programs(1))
    def _():
        cur_ref[...] = h_new.astype(cur_ref.dtype)


def _pack_params(params, input_size, hidden_size, H_pad, K0_pad, weight_dtype):
    """Stack + pad PyTorch-layout GRU weights for the fused kernel.

    Each layer's W (3H, in_dim) is split per-gate, transposed to (in_dim, H),
    zero-padded and re-concatenated so gate g lives at lanes [g*H_pad, (g+1)*H_pad).
    Returns:
      wih0     : (K0_pad, 3*H_pad)        layer-0 input-hidden weights
      wih_rest : (max(L-1,1), H_pad, 3*H_pad)  layers 1..L-1 input-hidden weights
      whh      : (L, H_pad, 3*H_pad)      hidden-hidden weights
      bias     : (L, 2, 3*H_pad) f32      row 0 = b_ih, row 1 = b_hh
    """
    H = hidden_size
    L = len(params)

    def pack_w(w, in_dim, k_pad):
        gates = jnp.split(w, 3, axis=0)                       # each (H, in_dim)
        cols = [jnp.pad(g.T, ((0, k_pad - in_dim), (0, H_pad - H)))
                for g in gates]
        return jnp.concatenate(cols, axis=1).astype(weight_dtype)

    def pack_b(b):
        gates = jnp.split(b, 3)
        return jnp.concatenate(
            [jnp.pad(g, (0, H_pad - H)) for g in gates]).astype(jnp.float32)

    wih0 = pack_w(params[0]["w_ih"], input_size, K0_pad)
    if L > 1:
        wih_rest = jnp.stack([pack_w(p["w_ih"], H, H_pad) for p in params[1:]])
    else:
        wih_rest = jnp.zeros((1, H_pad, 3 * H_pad), weight_dtype)  # dummy
    whh = jnp.stack([pack_w(p["w_hh"], H, H_pad) for p in params])
    bias = jnp.stack([jnp.stack([pack_b(p["b_ih"]), pack_b(p["b_hh"])])
                      for p in params])                        # (L, 2, 3*H_pad)
    return wih0, wih_rest, whh, bias


def multilayer_gru_cell(x, h, params, weight_dtype=jnp.bfloat16,
                        max_batch_tile=512):
    """Matches MultiLayerGRUCell.forward (dropout = identity / eval mode).

    Args:
      x: (batch, input_size) float32
      h: (num_layers, batch, hidden_size) float32
      params: list of dicts with PyTorch-layout keys
              w_ih (3H, in_dim), w_hh (3H, H), b_ih (3H,), b_hh (3H,)
      weight_dtype: dtype for the matmul weights (bf16 default; f32 exact path).
      max_batch_tile: upper bound on the batch tile size.
    Returns:
      (num_layers, batch, hidden_size) float32
    """
    B, input_size = x.shape
    L, _, H = h.shape

    H_pad = _round_up(H, 128)
    K0_pad = _round_up(input_size, 128)

    # Balanced batch tiles: minimal pad rows, fewer blocks => fewer weight
    # re-streams from HBM (the dominant cost at typical GRUCell batch sizes).
    nb = max(1, _cdiv(B, max_batch_tile))
    TB = _round_up(_cdiv(B, nb), 8)
    B_pad = _round_up(B, TB)
    nb = B_pad // TB
    # TODO(synk): on v7x (2 TensorCores) force nb >= 2 for B >= ~256 in the
    #             compute-bound (bf16-weight, large-batch) regime so the
    #             "parallel" batch axis actually uses both cores.

    wih0, wih_rest, whh, bias = _pack_params(params, input_size, H, H_pad,
                                             K0_pad, weight_dtype)

    x_pad = jnp.zeros((B_pad, K0_pad), jnp.float32)
    x_pad = x_pad.at[:B, :input_size].set(x.astype(jnp.float32))
    h_pad = jnp.zeros((L, B_pad, H_pad), jnp.float32)
    h_pad = h_pad.at[:, :B, :H].set(h.astype(jnp.float32))
    # TODO(synk): for an RNN time loop, keep the state in padded (L,B_pad,H_pad)
    #             layout across steps and alias it to the output via
    #             input_output_aliases to avoid per-step pad/slice HBM passes.

    wsz = jnp.dtype(weight_dtype).itemsize
    Lm1 = max(L - 1, 1)
    w_bytes = ((K0_pad + Lm1 * H_pad + L * H_pad) * 3 * H_pad * wsz
               + L * 2 * 3 * H_pad * 4)

    # Advisory cost estimate so XLA schedules surrounding ops sensibly.
    cost = pl.CostEstimate(
        flops=2 * B_pad * 3 * H_pad * (K0_pad + (2 * L - 1) * H_pad),
        transcendentals=3 * B_pad * L * H_pad,
        bytes_accessed=(B_pad * K0_pad * 4            # x
                        + 2 * L * B_pad * H_pad * 4   # h in + h' out
                        + nb * w_bytes))              # weights re-streamed / block

    # VMEM budget: double-buffered per-step blocks + scratch + compute
    # intermediates, capped at 75% of physical VMEM (v7x has only 64 MiB).
    blk_bytes = (TB * K0_pad * 4                      # x block
                 + 2 * TB * H_pad * 4                 # h block + out block
                 + (K0_pad + 2 * H_pad) * 3 * H_pad * wsz   # wih0 + wih + whh
                 + 2 * 3 * H_pad * 4)                 # bias block
    scratch_bytes = TB * H_pad * wsz + TB * 3 * H_pad * 4
    interm_bytes = 10 * TB * H_pad * 4                # gi/gh/r/z/n/h_new temps
    need = 2 * blk_bytes + scratch_bytes + interm_bytes + (2 << 20)
    try:
        vmem_cap = pltpu.get_tpu_info().vmem_capacity_bytes
    except Exception:
        vmem_cap = 64 * 1024 * 1024
    vmem_limit = int(max(8 << 20, min(int(0.75 * vmem_cap), need)))

    out = pl.pallas_call(
        _fused_gru_kernel,
        out_shape=jax.ShapeDtypeStruct((L, B_pad, H_pad), jnp.float32),
        grid_spec=pltpu.PrefetchScalarGridSpec(
            num_scalar_prefetch=0,
            grid=(nb, L),
            in_specs=[
                # x: constant in l -> DMA'd once per batch block.
                pl.BlockSpec((TB, K0_pad), lambda b, l: (b, 0)),
                pl.BlockSpec((1, TB, H_pad), lambda b, l: (l, b, 0)),       # h
                # layer-0 W_ih: constant index -> DMA'd once.
                pl.BlockSpec((K0_pad, 3 * H_pad), lambda b, l: (0, 0)),
                # layers>=1 W_ih: block l-1 (clamped; unused at l==0 and the
                # clamp keeps the same block index so no extra DMA is issued).
                pl.BlockSpec((1, H_pad, 3 * H_pad),
                             lambda b, l: (jnp.maximum(l, 1) - 1, 0, 0)),
                pl.BlockSpec((1, H_pad, 3 * H_pad), lambda b, l: (l, 0, 0)),  # W_hh
                pl.BlockSpec((1, 2, 3 * H_pad), lambda b, l: (l, 0, 0)),    # biases
            ],
            out_specs=pl.BlockSpec((1, TB, H_pad), lambda b, l: (l, b, 0)),
            scratch_shapes=[pltpu.VMEM((TB, H_pad), weight_dtype),      # carry
                            pltpu.VMEM((TB, 3 * H_pad), jnp.float32)],  # gi
        ),
        compiler_params=pltpu.CompilerParams(
            dimension_semantics=("parallel", "arbitrary"),
            vmem_limit_bytes=vmem_limit,
        ),
        cost_estimate=cost,
    )(x_pad, h_pad, wih0, wih_rest, whh, bias)

    return out[:, :B, :H]


def init_params(key, input_size, hidden_size, num_layers):
    """Deterministic PyTorch-style init: U(-1/sqrt(H), 1/sqrt(H)), raw layout."""
    stdv = 1.0 / math.sqrt(hidden_size)
    params = []
    for i in range(num_layers):
        in_dim = input_size if i == 0 else hidden_size
        key, k1, k2, k3, k4 = jax.random.split(key, 5)
        params.append({
            "w_ih": jax.random.uniform(k1, (3 * hidden_size, in_dim),
                                       minval=-stdv, maxval=stdv,
                                       dtype=jnp.float32),
            "w_hh": jax.random.uniform(k2, (3 * hidden_size, hidden_size),
                                       minval=-stdv, maxval=stdv,
                                       dtype=jnp.float32),
            "b_ih": jax.random.uniform(k3, (3 * hidden_size,),
                                       minval=-stdv, maxval=stdv,
                                       dtype=jnp.float32),
            "b_hh": jax.random.uniform(k4, (3 * hidden_size,),
                                       minval=-stdv, maxval=stdv,
                                       dtype=jnp.float32),
        })
    return params


def reference_jax(x, h, params):
    """Pure-JAX reference of the same forward pass (PyTorch nn.GRUCell math)."""
    H = h.shape[-1]
    outs = []
    cur = x
    for i, p in enumerate(params):
        gi = cur @ p["w_ih"].T + p["b_ih"]
        gh = h[i] @ p["w_hh"].T + p["b_hh"]
        r = jax.nn.sigmoid(gi[:, :H] + gh[:, :H])
        z = jax.nn.sigmoid(gi[:, H:2 * H] + gh[:, H:2 * H])
        n = jnp.tanh(gi[:, 2 * H:] + r * gh[:, 2 * H:])
        cur = (1.0 - z) * n + z * h[i]
        outs.append(cur)
    return jnp.stack(outs, axis=0)


if __name__ == "__main__":
    batch, input_size, hidden_size, num_layers = 2, 16, 32, 3
    drop_p = 0.5  # inference-mode dropout => identity

    key = jax.random.PRNGKey(0)
    key, kx, kh, kp = jax.random.split(key, 4)
    x = jax.random.normal(kx, (batch, input_size), dtype=jnp.float32)
    h = jax.random.normal(kh, (num_layers, batch, hidden_size),
                          dtype=jnp.float32)
    params = init_params(kp, input_size, hidden_size, num_layers)

    ref = reference_jax(x, h, params)

    # Exact path (f32 weights).
    out_f32 = jax.block_until_ready(
        multilayer_gru_cell(x, h, params, weight_dtype=jnp.float32))
    assert out_f32.shape == (num_layers, batch, hidden_size)
    assert float(jnp.max(jnp.abs(out_f32 - ref))) < 1e-5

    # Default fast path (bf16 weights, f32 gate math) — looser tolerance.
    out_bf16 = jax.block_until_ready(multilayer_gru_cell(x, h, params))
    assert out_bf16.shape == (num_layers, batch, hidden_size)
    assert float(jnp.max(jnp.abs(out_bf16 - ref))) < 5e-2

    print("KERNEL_OK")
</pallas_src>

<mosaic_0001>
module attributes {stable_mosaic.version = 11 : i64} {
  func.func @_fused_gru_kernel(%arg0: i32, %arg1: i32, %arg2: memref<8x128xf32, #tpu.memory_space<vmem>>, %arg3: memref<1x8x128xf32, #tpu.memory_space<vmem>>, %arg4: memref<128x384xf32, #tpu.memory_space<vmem>>, %arg5: memref<1x128x384xf32, #tpu.memory_space<vmem>>, %arg6: memref<1x128x384xf32, #tpu.memory_space<vmem>>, %arg7: memref<1x2x384xf32, #tpu.memory_space<vmem>>, %arg8: memref<1x8x128xf32, #tpu.memory_space<vmem>>, %arg9: memref<8x128xf32, #tpu.memory_space<vmem>>, %arg10: memref<8x384xf32, #tpu.memory_space<vmem>>) attributes {dimension_semantics = [#tpu.dimension_semantics<parallel>, #tpu.dimension_semantics<arbitrary>], iteration_bounds = array<i64: 1, 3>, scalar_prefetch = 0 : i64, scratch_operands = 2 : i64, tpu.core_type = #tpu.core_type<tc>, window_params = [{transform_indices = @transform_0, window_bounds = array<i64: 8, 128>}, {transform_indices = @transform_1, window_bounds = array<i64: 1, 8, 128>}, {pipeline_mode = #tpu.pipeline_mode<synchronous>, transform_indices = @transform_2, window_bounds = array<i64: 128, 384>}, {transform_indices = @transform_3, window_bounds = array<i64: 1, 128, 384>}, {transform_indices = @transform_4, window_bounds = array<i64: 1, 128, 384>}, {transform_indices = @transform_5, window_bounds = array<i64: 1, 2, 384>}, {transform_indices = @transform_6, window_bounds = array<i64: 1, 8, 128>}]} {
    %c0_i32 = arith.constant 0 : i32
    %0 = arith.cmpi eq, %arg1, %c0_i32 : i32
    %1 = arith.extui %0 : i1 to i32
    %c0_i32_0 = arith.constant 0 : i32
    %2 = arith.cmpi ne, %1, %c0_i32_0 : i32
    scf.if %2 {
      %c0_21 = arith.constant 0 : index
      %c0_22 = arith.constant 0 : index
      %51 = vector.load %arg4[%c0_21, %c0_22] : memref<128x384xf32, #tpu.memory_space<vmem>>, vector<128x384xf32>
      %c0_23 = arith.constant 0 : index
      %c0_24 = arith.constant 0 : index
      %52 = vector.load %arg2[%c0_23, %c0_24] : memref<8x128xf32, #tpu.memory_space<vmem>>, vector<8x128xf32>
      %cst_25 = arith.constant dense<0.000000e+00> : vector<8x384xf32>
      %53 = tpu.matmul %52, %51, %cst_25 {dimension_numbers = #tpu.dot_dimension_numbers<[1], [0], [0], [1], [0, 0, 1, 1], [], []>} : vector<8x128xf32>, vector<128x384xf32>, vector<8x384xf32> -> vector<8x384xf32>
      %c0_26 = arith.constant 0 : index
      %c0_27 = arith.constant 0 : index
      %54 = vector.load %arg10[%c0_26, %c0_27] : memref<8x384xf32, #tpu.memory_space<vmem>>, vector<8x384xf32>
      tpu.vector_store %arg10[%c0_26, %c0_27], %53 {strides = array<i32>} : memref<8x384xf32, #tpu.memory_space<vmem>>, vector<8x384xf32>,
    } else {
    }
    %c0_i32_1 = arith.constant 0 : i32
    %3 = arith.cmpi ne, %arg1, %c0_i32_1 : i32
    %4 = arith.extui %3 : i1 to i32
    %c0_i32_2 = arith.constant 0 : i32
    %5 = arith.cmpi ne, %4, %c0_i32_2 : i32
    scf.if %5 {
      %c0_21 = arith.constant 0 : index
      %c0_22 = arith.constant 0 : index
      %51 = vector.load %arg9[%c0_21, %c0_22] : memref<8x128xf32, #tpu.memory_space<vmem>>, vector<8x128xf32>
      %c0_23 = arith.constant 0 : index
      %c0_24 = arith.constant 0 : index
      %c0_25 = arith.constant 0 : index
      %52 = vector.load %arg5[%c0_23, %c0_24, %c0_25] : memref<1x128x384xf32, #tpu.memory_space<vmem>>, vector<1x128x384xf32>
      %53 = vector.shape_cast %52 : vector<1x128x384xf32> to vector<128x384xf32>
      %cst_26 = arith.constant dense<0.000000e+00> : vector<8x384xf32>
      %54 = tpu.matmul %51, %53, %cst_26 {dimension_numbers = #tpu.dot_dimension_numbers<[1], [0], [0], [1], [0, 0, 1, 1], [], []>} : vector<8x128xf32>, vector<128x384xf32>, vector<8x384xf32> -> vector<8x384xf32>
      %c0_27 = arith.constant 0 : index
      %c0_28 = arith.constant 0 : index
      %55 = vector.load %arg10[%c0_27, %c0_28] : memref<8x384xf32, #tpu.memory_space<vmem>>, vector<8x384xf32>
      tpu.vector_store %arg10[%c0_27, %c0_28], %54 {strides = array<i32>} : memref<8x384xf32, #tpu.memory_space<vmem>>, vector<8x384xf32>,
    } else {
    }
    %c0 = arith.constant 0 : index
    %c0_3 = arith.constant 0 : index
    %c0_4 = arith.constant 0 : index
    %6 = vector.load %arg3[%c0, %c0_3, %c0_4] : memref<1x8x128xf32, #tpu.memory_space<vmem>>, vector<1x8x128xf32>
    %7 = vector.shape_cast %6 : vector<1x8x128xf32> to vector<8x128xf32>
    %c0_5 = arith.constant 0 : index
    %c0_6 = arith.constant 0 : index
    %c0_7 = arith.constant 0 : index
    %8 = vector.load %arg6[%c0_5, %c0_6, %c0_7] : memref<1x128x384xf32, #tpu.memory_space<vmem>>, vector<1x128x384xf32>
    %9 = vector.shape_cast %8 : vector<1x128x384xf32> to vector<128x384xf32>
    %c0_8 = arith.constant 0 : index
    %c0_9 = arith.constant 0 : index
    %10 = vector.load %arg10[%c0_8, %c0_9] : memref<8x384xf32, #tpu.memory_space<vmem>>, vector<8x384xf32>
    %c0_10 = arith.constant 0 : index
    %c0_11 = arith.constant 0 : index
    %c0_12 = arith.constant 0 : index
    %11 = vector.load %arg7[%c0_10, %c0_11, %c0_12] : memref<1x2x384xf32, #tpu.memory_space<vmem>>, vector<1x1x384xf32>
    %12 = vector.shape_cast %11 : vector<1x1x384xf32> to vector<1x384xf32>
    %13 = vector.broadcast %12 : vector<1x384xf32> to vector<8x384xf32>
    %14 = arith.addf %10, %13 : vector<8x384xf32>
    %cst = arith.constant dense<0.000000e+00> : vector<8x384xf32>
    %15 = tpu.matmul %7, %9, %cst {dimension_numbers = #tpu.dot_dimension_numbers<[1], [0], [0], [1], [0, 0, 1, 1], [], []>} : vector<8x128xf32>, vector<128x384xf32>, vector<8x384xf32> -> vector<8x384xf32>
    %c0_13 = arith.constant 0 : index
    %c1 = arith.constant 1 : index
    %c0_14 = arith.constant 0 : index
    %16 = vector.load %arg7[%c0_13, %c1, %c0_14] : memref<1x2x384xf32, #tpu.memory_space<vmem>>, vector<1x1x384xf32>
    %17 = vector.shape_cast %16 : vector<1x1x384xf32> to vector<1x384xf32>
    %18 = vector.broadcast %17 : vector<1x384xf32> to vector<8x384xf32>
    %19 = arith.addf %15, %18 : vector<8x384xf32>
    %20 = vector.extract_strided_slice %14 {offsets = [0, 0], sizes = [8, 128], strides = [1, 1]} : vector<8x384xf32> to vector<8x128xf32>
    %21 = vector.extract_strided_slice %19 {offsets = [0, 0], sizes = [8, 128], strides = [1, 1]} : vector<8x384xf32> to vector<8x128xf32>
    %22 = arith.addf %20, %21 : vector<8x128xf32>
    %23 = arith.negf %22 : vector<8x128xf32>
    %24 = math.exp %23 : vector<8x128xf32>
    %cst_15 = arith.constant 1.000000e+00 : f32
    %25 = vector.broadcast %cst_15 : f32 to vector<8x128xf32>
    %26 = arith.addf %25, %24 : vector<8x128xf32>
    %27 = arith.divf %25, %26 : vector<8x128xf32>
    %28 = vector.extract_strided_slice %14 {offsets = [0, 128], sizes = [8, 128], strides = [1, 1]} : vector<8x384xf32> to vector<8x128xf32>
    %29 = vector.extract_strided_slice %19 {offsets = [0, 128], sizes = [8, 128], strides = [1, 1]} : vector<8x384xf32> to vector<8x128xf32>
    %30 = arith.addf %28, %29 : vector<8x128xf32>
    %31 = arith.negf %30 : vector<8x128xf32>
    %32 = math.exp %31 : vector<8x128xf32>
    %cst_16 = arith.constant 1.000000e+00 : f32
    %33 = vector.broadcast %cst_16 : f32 to vector<8x128xf32>
    %34 = arith.addf %33, %32 : vector<8x128xf32>
    %35 = arith.divf %33, %34 : vector<8x128xf32>
    %36 = vector.extract_strided_slice %14 {offsets = [0, 256], sizes = [8, 128], strides = [1, 1]} : vector<8x384xf32> to vector<8x128xf32>
    %37 = vector.extract_strided_slice %19 {offsets = [0, 256], sizes = [8, 128], strides = [1, 1]} : vector<8x384xf32> to vector<8x128xf32>
    %38 = arith.mulf %27, %37 : vector<8x128xf32>
    %39 = arith.addf %36, %38 : vector<8x128xf32>
    %40 = math.tanh %39 : vector<8x128xf32>
    %41 = arith.subf %7, %40 : vector<8x128xf32>
    %42 = arith.mulf %35, %41 : vector<8x128xf32>
    %43 = arith.addf %40, %42 : vector<8x128xf32>
    %c0_17 = arith.constant 0 : index
    %c0_18 = arith.constant 0 : index
    %c0_19 = arith.constant 0 : index
    %44 = vector.load %arg8[%c0_17, %c0_18, %c0_19] : memref<1x8x128xf32, #tpu.memory_space<vmem>>, vector<1x8x128xf32>
    %45 = vector.shape_cast %44 : vector<1x8x128xf32> to vector<8x128xf32>
    %46 = vector.shape_cast %43 : vector<8x128xf32> to vector<1x8x128xf32>
    tpu.vector_store %arg8[%c0_17, %c0_18, %c0_19], %46 {strides = array<i32>} : memref<1x8x128xf32, #tpu.memory_space<vmem>>, vector<1x8x128xf32>,
    %c1_i32 = arith.constant 1 : i32
    %47 = arith.addi %arg1, %c1_i32 : i32
    %c3_i32 = arith.constant 3 : i32
    %48 = arith.cmpi slt, %47, %c3_i32 : i32
    %49 = arith.extui %48 : i1 to i32
    %c0_i32_20 = arith.constant 0 : i32
    %50 = arith.cmpi ne, %49, %c0_i32_20 : i32
    scf.if %50 {
      %c0_21 = arith.constant 0 : index
      %c0_22 = arith.constant 0 : index
      %51 = vector.load %arg9[%c0_21, %c0_22] : memref<8x128xf32, #tpu.memory_space<vmem>>, vector<8x128xf32>
      tpu.vector_store %arg9[%c0_21, %c0_22], %43 {strides = array<i32>} : memref<8x128xf32, #tpu.memory_space<vmem>>, vector<8x128xf32>,
    } else {
    }
    return
  }
  func.func @transform_0(%arg0: i32, %arg1: i32) -> (i32, i32) {
    %c0_i32 = arith.constant 0 : i32
    %c0_i32_0 = arith.constant 0 : i32
    return %arg0, %c0_i32 : i32, i32
  }
  func.func @transform_1(%arg0: i32, %arg1: i32) -> (i32, i32, i32) {
    %c0_i32 = arith.constant 0 : i32
    %c0_i32_0 = arith.constant 0 : i32
    return %arg1, %arg0, %c0_i32 : i32, i32, i32
  }
  func.func @transform_2(%arg0: i32, %arg1: i32) -> (i32, i32) {
    %c0_i32 = arith.constant 0 : i32
    %c0_i32_0 = arith.constant 0 : i32
    %c0_i32_1 = arith.constant 0 : i32
    return %c0_i32, %c0_i32_0 : i32, i32
  }
  func.func @transform_3(%arg0: i32, %arg1: i32) -> (i32, i32, i32) {
    %c1_i32 = arith.constant 1 : i32
    %0 = arith.maxsi %arg1, %c1_i32 : i32
    %c1_i32_0 = arith.constant 1 : i32
    %1 = arith.subi %0, %c1_i32_0 : i32
    %c0_i32 = arith.constant 0 : i32
    %c0_i32_1 = arith.constant 0 : i32
    %c0_i32_2 = arith.constant 0 : i32
    return %1, %c0_i32, %c0_i32_1 : i32, i32, i32
  }
  func.func @transform_4(%arg0: i32, %arg1: i32) -> (i32, i32, i32) {
    %c0_i32 = arith.constant 0 : i32
    %c0_i32_0 = arith.constant 0 : i32
    %c0_i32_1 = arith.constant 0 : i32
    return %arg1, %c0_i32, %c0_i32_0 : i32, i32, i32
  }
  func.func @transform_5(%arg0: i32, %arg1: i32) -> (i32, i32, i32) {
    %c0_i32 = arith.constant 0 : i32
    %c0_i32_0 = arith.constant 0 : i32
    %c0_i32_1 = arith.constant 0 : i32
    return %arg1, %c0_i32, %c0_i32_0 : i32, i32, i32
  }
  func.func @transform_6(%arg0: i32, %arg1: i32) -> (i32, i32, i32) {
    %c0_i32 = arith.constant 0 : i32
    %c0_i32_0 = arith.constant 0 : i32
    return %arg1, %arg0, %c0_i32 : i32, i32, i32
  }
}

</mosaic_0001>

<llo_original>
// kernel: tpu_custom_call.1
$region0: #{tpu_custom_call.1}
  #allocation0 [shape = 'u32[]', space=smem, size = 0x4, offset = 0x4, fixed_abs, tag = 'smem constant byte address 0x4 - core index']
  #allocation1 [shape = 'u32[144,128]{1,0:T(1,128)}', space=vmem, size = 0x12000, scoped, tag = 'internal scratch']
  #allocation2 [shape = 'f32[8,128]{1,0:T(8,128)}', space=vmem, size = 0x1000, scoped, tag = 'scratch operand']
  #allocation3 [shape = 'f32[8,384]{1,0:T(8,128)}', space=vmem, size = 0x3000, scoped, tag = 'scratch operand']
  %s0 = inlined_call_operand.hbm [shape: f32[8,128], index: 0, kind: input, shape index: {}]
  %s1 = inlined_call_operand.hbm [shape: f32[3,8,128], index: 1, kind: input, shape index: {}]
  %s2 = inlined_call_operand.hbm [shape: f32[128,384], index: 2, kind: input, shape index: {}]
  %s3 = inlined_call_operand.hbm [shape: f32[2,128,384], index: 3, kind: input, shape index: {}]
  %s4 = inlined_call_operand.hbm [shape: f32[3,128,384], index: 4, kind: input, shape index: {}]
  %s5 = inlined_call_operand.vmem [shape: f32[3,2,384], index: 5, kind: input, shape index: {}]
  %s6 = inlined_call_operand.hbm [shape: f32[3,8,128], index: 6, kind: output, shape index: {}]
  %s7 = sld [smem:[#allocation0]]
  $region89: #{tpu_custom_call.1} parent=0
    _
  %s9 = ssub.s32 1, %s7
  %s10 = scalar_select 0, %s9, %s7
  $region1: #{tpu_custom_call.1} parent=0
    #allocation4 [shape = 'u8[4096]{0}', space=vmem, size = 0x1000, scoped, tag = 'input window, operand 0, single buffered']
    #allocation5 [shape = 's32[2]{0}', space=sflag, size = 0x8, scoped, tag = 'scoped memory for tpu_custom_call.1']
    #allocation6 [shape = 's32[2]{0}', space=sflag, size = 0x8, scoped, tag = 'scoped memory for tpu_custom_call.1']
    #allocation7 [shape = 'u8[8192]{0}', space=vmem, size = 0x2000, scoped, tag = 'input window, operand 1']
    #allocation8 [shape = 's32[2]{0}', space=sflag, size = 0x8, scoped, tag = 'scoped memory for tpu_custom_call.1']
    #allocation9 [shape = 'u8[196608]{0}', space=vmem, size = 0x30000, scoped, tag = 'input window, operand 2, single buffered']
    #allocation10 [shape = 'u8[393216]{0}', space=vmem, size = 0x60000, scoped, tag = 'input window, operand 3']
    #allocation11 [shape = 's32[2]{0}', space=sflag, size = 0x8, scoped, tag = 'scoped memory for tpu_custom_call.1']
    #allocation12 [shape = 'u8[393216]{0}', space=vmem, size = 0x60000, scoped, tag = 'input window, operand 4']
    #allocation13 [shape = 'u8[8192]{0}', space=vmem, size = 0x2000, scoped, tag = 'output window, operand 0']
    %11 = vsyncpa [#allocation5], 0
    %12 = vsyncpa [#allocation8], 0
    %s13 = scalar_lea.sflag [#allocation8], 1
    %14 = vsyncpa %s13, 0
    %15 = vsyncpa [#allocation11], 0
    %s16 = scalar_lea.sflag [#allocation11], 1
    %17 = vsyncpa %s16, 0
    %18 = vsyncpa [#allocation6], 0
    %s19 = scalar_lea.sflag [#allocation6], 1
    %20 = vsyncpa %s19, 0
    loop: start=0, step=1, limit=5
    $region2: #{tpu_custom_call.1} parent=1 // loop_pre_header
      _
    $region3: #{tpu_custom_call.1} parent=1 // loop_header
      %s22 = sphi 0, %s26
      %p23 = scmp.ge.s32.totalorder %s22, 5
      %s29 = sphi 0, %s41
      %s30 = sphi 0, %s37
      %s31 = sphi 0, %s29
      %s32 = sphi 0, %s30
      %s33 = sphi 0, %s31
      %s34 = sphi 0, %s32
      %s44 = sphi 0, %s46
      %s47 = sphi 0, %s44
      %s48 = sphi 0, %s47
      %s64 = sphi 0, %s48
      %s72 = sphi 0, %s74
      %s75 = sphi 0, %s72
      %s76 = sphi 0, %s75
      %s92 = sphi 0, %s76
      %s96 = sphi 0, %s96
      %s98 = sphi 0, %s96
      %s99 = sphi 0, %s98
      %s113 = sphi 0, %s99
      %s125 = sphi 0, %s127
      %s128 = sphi 0, %s125
      %s129 = sphi 0, %s128
      %s145 = sphi 0, %s129
      %s151 = sphi 0, %s153
      %s154 = sphi 0, %s151
      %s155 = sphi 0, %s154
      %s171 = sphi 0, %s155
      %s177 = sphi 0, %s179
      %s180 = sphi 0, %s177
      %s181 = sphi 0, %s180
      %s197 = sphi 0, %s181
      %s205 = sphi 0, %s207
      %s208 = sphi 0, %s205
      %s209 = sphi 0, %s208
      %s225 = sphi 0, %s209
    $region4: #{tpu_custom_call.1} parent=1 // loop_header_branch
      %25 = sbr.rel (%p23) target = $region8
    $region5: #{tpu_custom_call.1} parent=1 // loop_body
      %s27 = ssub.s32 %s22, 1
      %s28 = ssub.s32 %s22, 2
      %s35 = sadd.s32 1, %s30
      %p36 = scmp.ge.s32.totalorder %s35, 3
      %s37 = scalar_select %p36, 0, %s35
      %s38 = sadd.s32 1, %s29
      %s39 = scalar_select %p36, %s38, %s29
      %p40 = scmp.ge.s32.totalorder %s39, 1
      %s41 = scalar_select %p40, 0, %s39
      %s42 = ssub.s32 %s29, %s41
      %p43 = scmp.eq.s32.totalorder %s42, 0
      %s45 = sadd.s32 %s44, 1
      %s46 = scalar_select %p43, %s44, %s45
      %p49 = pneg %p43
      %p50 = scmp.eq.s32.totalorder %s22, 2
      %p51 = por %p49, %p50
      %p52 = scmp.ne.s32.totalorder %s44, %s47
      %p53 = scmp.eq.s32.totalorder %s22, 0
      %p54 = por %p52, %p53
      %p55 = scmp.ne.s32.totalorder %s44, %s47
      %p56 = scmp.eq.s32.totalorder %s27, 2
      %p57 = por %p55, %p56
      %p58 = scmp.ne.s32.totalorder %s47, %s48
      %p59 = scmp.eq.s32.totalorder %s27, 0
      %p60 = por %p58, %p59
      %p61 = scmp.ne.s32.totalorder %s47, %s48
      %p62 = scmp.eq.s32.totalorder %s28, 2
      %p63 = por %p61, %p62
      %p65 = scmp.ne.s32.totalorder %s48, %s64
      %p66 = scmp.eq.s32.totalorder %s28, 0
      %p67 = por %p65, %p66
      %s68 = ssub.s32 %s30, %s37
      %s69 = ssub.s32 %s29, %s41
      %s70 = sor.u32 %s68, %s69
      %p71 = scmp.eq.s32.totalorder %s70, 0
      %s73 = sadd.s32 %s72, 1
      %s74 = scalar_select %p71, %s72, %s73
      %p77 = pneg %p71
      %p78 = scmp.eq.s32.totalorder %s22, 2
      %p79 = por %p77, %p78
      %p80 = scmp.ne.s32.totalorder %s72, %s75
      %p81 = scmp.eq.s32.totalorder %s22, 0
      %p82 = por %p80, %p81
      %p83 = scmp.ne.s32.totalorder %s72, %s75
      %p84 = scmp.eq.s32.totalorder %s27, 2
      %p85 = por %p83, %p84
      %p86 = scmp.ne.s32.totalorder %s75, %s76
      %p87 = scmp.eq.s32.totalorder %s27, 0
      %p88 = por %p86, %p87
      %p89 = scmp.ne.s32.totalorder %s75, %s76
      %p90 = scmp.eq.s32.totalorder %s28, 2
      %p91 = por %p89, %p90
      %p93 = scmp.ne.s32.totalorder %s76, %s92
      %p94 = scmp.eq.s32.totalorder %s28, 0
      %p95 = por %p93, %p94
      %s97 = sadd.s32 %s96, 1
      %p100 = scmp.eq.s32.totalorder %s22, 2
      %p101 = scmp.ne.s32.totalorder %s96, %s98
      %p102 = scmp.eq.s32.totalorder %s22, 0
      %p103 = por %p101, %p102
      %p104 = scmp.ne.s32.totalorder %s96, %s98
      %p105 = scmp.eq.s32.totalorder %s27, 2
      %p106 = por %p104, %p105
      %p107 = scmp.ne.s32.totalorder %s98, %s99
      %p108 = scmp.eq.s32.totalorder %s27, 0
      %p109 = por %p107, %p108
      %p110 = scmp.ne.s32.totalorder %s98, %s99
      %p111 = scmp.eq.s32.totalorder %s28, 2
      %p112 = por %p110, %p111
      %p114 = scmp.ne.s32.totalorder %s99, %s113
      %p115 = scmp.eq.s32.totalorder %s28, 0
      %p116 = por %p114, %p115
      %p117 = scmp.gt.s32.totalorder %s30, 1
      %s118 = scalar_select %p117, %s30, 1
      %s119 = ssub.s32 %s118, 1
      %p120 = scmp.gt.s32.totalorder %s37, 1
      %s121 = scalar_select %p120, %s37, 1
      %s122 = ssub.s32 %s121, 1
      %s123 = ssub.s32 %s119, %s122
      %p124 = scmp.eq.s32.totalorder %s123, 0
      %s126 = sadd.s32 %s125, 1
      %s127 = scalar_select %p124, %s125, %s126
      %p130 = pneg %p124
      %p131 = scmp.eq.s32.totalorder %s22, 2
      %p132 = por %p130, %p131
      %p133 = scmp.ne.s32.totalorder %s125, %s128
      %p134 = scmp.eq.s32.totalorder %s22, 0
      %p135 = por %p133, %p134
      %p136 = scmp.ne.s32.totalorder %s125, %s128
      %p137 = scmp.eq.s32.totalorder %s27, 2
      %p138 = por %p136, %p137
      %p139 = scmp.ne.s32.totalorder %s128, %s129
      %p140 = scmp.eq.s32.totalorder %s27, 0
      %p141 = por %p139, %p140
      %p142 = scmp.ne.s32.totalorder %s128, %s129
      %p143 = scmp.eq.s32.totalorder %s28, 2
      %p144 = por %p142, %p143
      %p146 = scmp.ne.s32.totalorder %s129, %s145
      %p147 = scmp.eq.s32.totalorder %s28, 0
      %p148 = por %p146, %p147
      %s149 = ssub.s32 %s30, %s37
      %p150 = scmp.eq.s32.totalorder %s149, 0
      %s152 = sadd.s32 %s151, 1
      %s153 = scalar_select %p150, %s151, %s152
      %p156 = pneg %p150
      %p157 = scmp.eq.s32.totalorder %s22, 2
      %p158 = por %p156, %p157
      %p159 = scmp.ne.s32.totalorder %s151, %s154
      %p160 = scmp.eq.s32.totalorder %s22, 0
      %p161 = por %p159, %p160
      %p162 = scmp.ne.s32.totalorder %s151, %s154
      %p163 = scmp.eq.s32.totalorder %s27, 2
      %p164 = por %p162, %p163
      %p165 = scmp.ne.s32.totalorder %s154, %s155
      %p166 = scmp.eq.s32.totalorder %s27, 0
      %p167 = por %p165, %p166
      %p168 = scmp.ne.s32.totalorder %s154, %s155
      %p169 = scmp.eq.s32.totalorder %s28, 2
      %p170 = por %p168, %p169
      %p172 = scmp.ne.s32.totalorder %s155, %s171
      %p173 = scmp.eq.s32.totalorder %s28, 0
      %p174 = por %p172, %p173
      %s175 = ssub.s32 %s30, %s37
      %p176 = scmp.eq.s32.totalorder %s175, 0
      %s178 = sadd.s32 %s177, 1
      %s179 = scalar_select %p176, %s177, %s178
      %p182 = pneg %p176
      %p183 = scmp.eq.s32.totalorder %s22, 2
      %p184 = por %p182, %p183
      %p185 = scmp.ne.s32.totalorder %s177, %s180
      %p186 = scmp.eq.s32.totalorder %s22, 0
      %p187 = por %p185, %p186
      %p188 = scmp.ne.s32.totalorder %s177, %s180
      %p189 = scmp.eq.s32.totalorder %s27, 2
      %p190 = por %p188, %p189
      %p191 = scmp.ne.s32.totalorder %s180, %s181
      %p192 = scmp.eq.s32.totalorder %s27, 0
      %p193 = por %p191, %p192
      %p194 = scmp.ne.s32.totalorder %s180, %s181
      %p195 = scmp.eq.s32.totalorder %s28, 2
      %p196 = por %p194, %p195
      %p198 = scmp.ne.s32.totalorder %s181, %s197
      %p199 = scmp.eq.s32.totalorder %s28, 0
      %p200 = por %p198, %p199
      %s201 = ssub.s32 %s30, %s37
      %s202 = ssub.s32 %s29, %s41
      %s203 = sor.u32 %s201, %s202
      %p204 = scmp.eq.s32.totalorder %s203, 0
      %s206 = sadd.s32 %s205, 1
      %s207 = scalar_select %p204, %s205, %s206
      %p210 = pneg %p204
      %p211 = scmp.eq.s32.totalorder %s22, 2
      %p212 = por %p210, %p211
      %p213 = scmp.ne.s32.totalorder %s205, %s208
      %p214 = scmp.eq.s32.totalorder %s22, 0
      %p215 = por %p213, %p214
      %p216 = scmp.ne.s32.totalorder %s205, %s208
      %p217 = scmp.eq.s32.totalorder %s27, 2
      %p218 = por %p216, %p217
      %p219 = scmp.ne.s32.totalorder %s208, %s209
      %p220 = scmp.eq.s32.totalorder %s27, 0
      %p221 = por %p219, %p220
      %p222 = scmp.ne.s32.totalorder %s208, %s209
      %p223 = scmp.eq.s32.totalorder %s28, 2
      %p224 = por %p222, %p223
      %p226 = scmp.ne.s32.totalorder %s209, %s225
      %p227 = scmp.eq.s32.totalorder %s28, 0
      %p228 = por %p226, %p227
      %p229 = scmp.le.s32.totalorder 1, %s22
      %p230 = scmp.lt.s32.totalorder %s22, 4
      %p231 = pnand %p229, %p230
      %p232 = pneg %p231
      // Predicated region
      $region9: #{tpu_custom_call.1} parent=5 // pred_check
        _
      $region10: #{tpu_custom_call.1} parent=5 // pred_check_branch
        %234 = sbr.rel (%p231) target = $region12
      $region11: #{tpu_custom_call.1} parent=5 // pred_region
        %s235 = ssub.s32 %s22, 1
        // Predicated region
        $region13: #{tpu_custom_call.1} parent=11 // pred_check
          %p236 = pneg %p60
        $region14: #{tpu_custom_call.1} parent=11 // pred_check_branch
          %238 = sbr.rel (%p236) target = $region16
        $region15: #{tpu_custom_call.1} parent=11 // pred_region
          %s240 = ssub.s32 128, 128
          %241 = vsyncadd [#allocation5], %s240
          %s242 = smul.addr %s31, 128
          %s243 = scalar_lea.hbm %s0, %s242
          %s245 = sshll.u32 [#allocation4], 4
          %s246 = int_to_ptr.vmem [resolvable:$true] %s245
          %248 = dma.hbm_to_vmem [thread:$0]  %s243, 128, %s246, [#allocation5]
        $region16: #{tpu_custom_call.1} parent=11 // pred_fallthru
          _
        // Predicated region
        $region17: #{tpu_custom_call.1} parent=11 // pred_check
          %p249 = pneg %p109
        $region18: #{tpu_custom_call.1} parent=11 // pred_check_branch
          %251 = sbr.rel (%p249) target = $region20
        $region19: #{tpu_custom_call.1} parent=11 // pred_region
          %s253 = ssub.s32 6144, 6144
          %254 = vsyncadd [#allocation8], %s253
          %s255 = sshll.u32 [#allocation9], 4
          %s256 = int_to_ptr.vmem [resolvable:$true] %s255
          %261 = dma.hbm_to_vmem [thread:$0]  %s2, 6144, %s256, [#allocation8], 384, 384, 24
        $region20: #{tpu_custom_call.1} parent=11 // pred_fallthru
          _
      $region12: #{tpu_custom_call.1} parent=5 // pred_fallthru
        _
      %p262 = scmp.lt.s32.totalorder %s22, 3
      // Predicated region
      $region21: #{tpu_custom_call.1} parent=5 // pred_check
        %p263 = pneg %p262
      $region22: #{tpu_custom_call.1} parent=5 // pred_check_branch
        %265 = sbr.rel (%p263) target = $region24
      $region23: #{tpu_custom_call.1} parent=5 // pred_region
        // Predicated region
        $region25: #{tpu_custom_call.1} parent=23 // pred_check
          %p266 = pneg %p82
        $region26: #{tpu_custom_call.1} parent=23 // pred_check_branch
          %268 = sbr.rel (%p266) target = $region28
        $region27: #{tpu_custom_call.1} parent=23 // pred_region
          %s269 = sand.u32 %s22, 1
          %s270 = scalar_lea.sflag [#allocation8], %s269
          %s271 = sand.u32 %s72, 1
          %s272 = smul.addr %s271, 8
          %s273 = scalar_lea.vmem [#allocation7], %s272
          %s275 = ssub.s32 128, 128
          %276 = vsyncadd %s270, %s275
          %s277 = sadd.s32 %s29, %s30
          %s278 = smul.addr %s277, 128
          %s279 = scalar_lea.hbm %s1, %s278
          %s281 = sshll.u32 %s273, 4
          %s282 = int_to_ptr.vmem [resolvable:$true] %s281
          %284 = dma.hbm_to_vmem [thread:$0]  %s279, 128, %s282, %s270
        $region28: #{tpu_custom_call.1} parent=23 // pred_fallthru
          _
        // Predicated region
        $region29: #{tpu_custom_call.1} parent=23 // pred_check
          %p285 = pneg %p135
        $region30: #{tpu_custom_call.1} parent=23 // pred_check_branch
          %287 = sbr.rel (%p285) target = $region32
        $region31: #{tpu_custom_call.1} parent=23 // pred_region
          %s288 = sand.u32 %s22, 1
          %s289 = scalar_lea.sflag [#allocation11], %s288
          %s290 = sand.u32 %s125, 1
          %s291 = smul.addr %s290, 384
          %s292 = scalar_lea.vmem [#allocation10], %s291
          %p293 = scmp.gt.s32.totalorder %s30, 1
          %s294 = scalar_select %p293, %s30, 1
          %s295 = ssub.s32 %s294, 1
          %s297 = ssub.s32 6144, 6144
          %298 = vsyncadd %s289, %s297
          %s299 = smul.addr %s295, 48
          %s300 = smul.addr %s299, 128
          %s301 = scalar_lea.hbm %s3, %s300
          %s302 = sshll.u32 %s292, 4
          %s303 = int_to_ptr.vmem [resolvable:$true] %s302
          %308 = dma.hbm_to_vmem [thread:$0]  %s301, 6144, %s303, %s289, 384, 384, 24
        $region32: #{tpu_custom_call.1} parent=23 // pred_fallthru
          _
        // Predicated region
        $region33: #{tpu_custom_call.1} parent=23 // pred_check
          %p309 = pneg %p161
        $region34: #{tpu_custom_call.1} parent=23 // pred_check_branch
          %311 = sbr.rel (%p309) target = $region36
        $region35: #{tpu_custom_call.1} parent=23 // pred_region
          %s312 = sand.u32 %s22, 1
          %s313 = scalar_lea.sflag [#allocation11], %s312
          %s314 = sand.u32 %s151, 1
          %s315 = smul.addr %s314, 384
          %s316 = scalar_lea.vmem [#allocation12], %s315
          %s318 = ssub.s32 6144, 6144
          %319 = vsyncadd %s313, %s318
          %s320 = smul.addr %s30, 48
          %s321 = smul.addr %s320, 128
          %s322 = scalar_lea.hbm %s4, %s321
          %s323 = sshll.u32 %s316, 4
          %s324 = int_to_ptr.vmem [resolvable:$true] %s323
          %329 = dma.hbm_to_vmem [thread:$0]  %s322, 6144, %s324, %s313, 384, 384, 24
        $region36: #{tpu_custom_call.1} parent=23 // pred_fallthru
          _
        // Predicated region
        $region37: #{tpu_custom_call.1} parent=23 // pred_check
          %p330 = pneg %p187
        $region38: #{tpu_custom_call.1} parent=23 // pred_check_branch
          %332 = sbr.rel (%p330) target = $region40
        $region39: #{tpu_custom_call.1} parent=23 // pred_region
          %p333 = scmp.lt.s32.totalorder %s30, 2
          %s334 = scalar_select %p333, %s30, 2
          %s335 = smul.addr %s334, 3
          %s336 = smul.addr %s335, 2
          %s337 = scalar_lea.vmem %s5, %s336
        $region40: #{tpu_custom_call.1} parent=23 // pred_fallthru
          _
      $region24: #{tpu_custom_call.1} parent=5 // pred_fallthru
        _
      %p338 = scmp.le.s32.totalorder 1, %s22
      %p339 = scmp.lt.s32.totalorder %s22, 4
      %p340 = pnand %p338, %p339
      %p341 = pneg %p340
      // Predicated region
      $region41: #{tpu_custom_call.1} parent=5 // pred_check
        _
      $region42: #{tpu_custom_call.1} parent=5 // pred_check_branch
        %343 = sbr.rel (%p340) target = $region44
      $region43: #{tpu_custom_call.1} parent=5 // pred_region
        %s344 = ssub.s32 %s22, 1
        // Predicated region
        $region45: #{tpu_custom_call.1} parent=43 // pred_check
          %p345 = pneg %p60
        $region46: #{tpu_custom_call.1} parent=43 // pred_check_branch
          %347 = sbr.rel (%p345) target = $region48
        $region47: #{tpu_custom_call.1} parent=43 // pred_region
          %348 = dma.done [#allocation5], 128
        $region48: #{tpu_custom_call.1} parent=43 // pred_fallthru
          _
        %s349 = sand.u32 %s27, 1
        %s350 = scalar_lea.sflag [#allocation8], %s349
        %s351 = sand.u32 %s75, 1
        %s352 = smul.addr %s351, 8
        %s353 = scalar_lea.vmem [#allocation7], %s352
        // Predicated region
        $region49: #{tpu_custom_call.1} parent=43 // pred_check
          %p354 = pneg %p88
        $region50: #{tpu_custom_call.1} parent=43 // pred_check_branch
          %356 = sbr.rel (%p354) target = $region52
        $region51: #{tpu_custom_call.1} parent=43 // pred_region
          %357 = dma.done %s350, 128
        $region52: #{tpu_custom_call.1} parent=43 // pred_fallthru
          _
        // Predicated region
        $region53: #{tpu_custom_call.1} parent=43 // pred_check
          %p358 = pneg %p109
        $region54: #{tpu_custom_call.1} parent=43 // pred_check_branch
          %360 = sbr.rel (%p358) target = $region56
        $region55: #{tpu_custom_call.1} parent=43 // pred_region
          %361 = dma.done [#allocation8], 6144
        $region56: #{tpu_custom_call.1} parent=43 // pred_fallthru
          _
        %s362 = sand.u32 %s27, 1
        %s363 = scalar_lea.sflag [#allocation11], %s362
        %s364 = sand.u32 %s128, 1
        %s365 = smul.addr %s364, 384
        %s366 = scalar_lea.vmem [#allocation10], %s365
        // Predicated region
        $region57: #{tpu_custom_call.1} parent=43 // pred_check
          %p367 = pneg %p141
        $region58: #{tpu_custom_call.1} parent=43 // pred_check_branch
          %369 = sbr.rel (%p367) target = $region60
        $region59: #{tpu_custom_call.1} parent=43 // pred_region
          %370 = dma.done %s363, 6144
        $region60: #{tpu_custom_call.1} parent=43 // pred_fallthru
          _
        %s371 = sand.u32 %s27, 1
        %s372 = scalar_lea.sflag [#allocation11], %s371
        %s373 = sand.u32 %s154, 1
        %s374 = smul.addr %s373, 384
        %s375 = scalar_lea.vmem [#allocation12], %s374
        // Predicated region
        $region61: #{tpu_custom_call.1} parent=43 // pred_check
          %p376 = pneg %p167
        $region62: #{tpu_custom_call.1} parent=43 // pred_check_branch
          %378 = sbr.rel (%p376) target = $region64
        $region63: #{tpu_custom_call.1} parent=43 // pred_region
          %379 = dma.done %s372, 6144
        $region64: #{tpu_custom_call.1} parent=43 // pred_fallthru
          _
        %p380 = pneg %p60
        %p381 = pneg %p57
        %s382 = sand.u32 %s27, 1
        %s383 = scalar_lea.sflag [#allocation8], %s382
        %s384 = sand.u32 %s75, 1
        %s385 = smul.addr %s384, 8
        %s386 = scalar_lea.vmem [#allocation7], %s385
        %p387 = pneg %p88
        %p388 = pneg %p85
        %p389 = pneg %p109
        %p390 = pneg %p106
        %s391 = sand.u32 %s27, 1
        %s392 = scalar_lea.sflag [#allocation11], %s391
        %s393 = sand.u32 %s128, 1
        %s394 = smul.addr %s393, 384
        %s395 = scalar_lea.vmem [#allocation10], %s394
        %p396 = pneg %p141
        %p397 = pneg %p138
        %s398 = sand.u32 %s27, 1
        %s399 = scalar_lea.sflag [#allocation11], %s398
        %s400 = sand.u32 %s154, 1
        %s401 = smul.addr %s400, 384
        %s402 = scalar_lea.vmem [#allocation12], %s401
        %p403 = pneg %p167
        %p404 = pneg %p164
        %p405 = scmp.lt.s32.totalorder %s32, 2
        %s406 = scalar_select %p405, %s32, 2
        %s407 = smul.addr %s406, 3
        %s408 = smul.addr %s407, 2
        %s409 = scalar_lea.vmem %s5, %s408
        %p410 = pneg %p193
        %p411 = pneg %p190
        %p412 = pneg %p221
        %p413 = pneg %p218
        %s414 = sand.u32 %s208, 1
        %s415 = scalar_lea.sflag [#allocation6], %s414
        %s416 = sand.u32 %s208, 1
        %s417 = smul.addr %s416, 8
        %s418 = scalar_lea.vmem [#allocation13], %s417
        %p419 = scmp.gt.s32.totalorder %s32, 1
        %s420 = scalar_select %p419, %s32, 1
        %s421 = ssub.s32 %s420, 1
        %p422 = scmp.lt.s32.totalorder %s32, 2
        %s423 = scalar_select %p422, %s32, 2
        %s424 = smul.addr %s423, 3
        %s425 = smul.addr %s424, 2
        %s426 = scalar_lea.vmem %s5, %s425
        %p427 = scmp.eq.s32.totalorder %s32, 0
        // Predicated region
        $region65: #{tpu_custom_call.1} parent=43 // pred_check
          %p428 = pneg %p427
        $region66: #{tpu_custom_call.1} parent=43 // pred_check_branch
          %430 = sbr.rel (%p428) target = $region68
        $region67: #{tpu_custom_call.1} parent=43 // pred_region
          %v431 = vld [vmem:[#allocation9] sm:$0xff]
          %v432 = vld [vmem:[#allocation9 + $0x8] sm:$0xff]
          %v433 = vld [vmem:[#allocation9 + $0x10] sm:$0xff]
          %v434 = vld [vmem:[#allocation9 + $0x18] sm:$0xff]
          %v435 = vld [vmem:[#allocation9 + $0x20] sm:$0xff]
          %v436 = vld [vmem:[#allocation9 + $0x28] sm:$0xff]
          %v437 = vld [vmem:[#allocation9 + $0x30] sm:$0xff]
          %v438 = vld [vmem:[#allocation9 + $0x38] sm:$0xff]
          %v439 = vld [vmem:[#allocation9 + $0x40] sm:$0xff]
          %v440 = vld [vmem:[#allocation9 + $0x48] sm:$0xff]
          %v441 = vld [vmem:[#allocation9 + $0x50] sm:$0xff]
          %v442 = vld [vmem:[#allocation9 + $0x58] sm:$0xff]
          %v443 = vld [vmem:[#allocation9 + $0x60] sm:$0xff]
          %v444 = vld [vmem:[#allocation9 + $0x68] sm:$0xff]
          %v445 = vld [vmem:[#allocation9 + $0x70] sm:$0xff]
          %v446 = vld [vmem:[#allocation9 + $0x78] sm:$0xff]
          %v447 = vld [vmem:[#allocation9 + $0x80] sm:$0xff]
          %v448 = vld [vmem:[#allocation9 + $0x88] sm:$0xff]
          %v449 = vld [vmem:[#allocation9 + $0x90] sm:$0xff]
          %v450 = vld [vmem:[#allocation9 + $0x98] sm:$0xff]
          %v451 = vld [vmem:[#allocation9 + $0xa0] sm:$0xff]
          %v452 = vld [vmem:[#allocation9 + $0xa8] sm:$0xff]
          %v453 = vld [vmem:[#allocation9 + $0xb0] sm:$0xff]
          %v454 = vld [vmem:[#allocation9 + $0xb8] sm:$0xff]
          %v455 = vld [vmem:[#allocation9 + $0xc0] sm:$0xff]
          %v456 = vld [vmem:[#allocation9 + $0xc8] sm:$0xff]
          %v457 = vld [vmem:[#allocation9 + $0xd0] sm:$0xff]
          %v458 = vld [vmem:[#allocation9 + $0xd8] sm:$0xff]
          %v459 = vld [vmem:[#allocation9 + $0xe0] sm:$0xff]
          %v460 = vld [vmem:[#allocation9 + $0xe8] sm:$0xff]
          %v461 = vld [vmem:[#allocation9 + $0xf0] sm:$0xff]
          %v462 = vld [vmem:[#allocation9 + $0xf8] sm:$0xff]
          %v463 = vld [vmem:[#allocation9 + $0x100] sm:$0xff]
          %v464 = vld [vmem:[#allocation9 + $0x108] sm:$0xff]
          %v465 = vld [vmem:[#allocation9 + $0x110] sm:$0xff]
          %v466 = vld [vmem:[#allocation9 + $0x118] sm:$0xff]
          %v467 = vld [vmem:[#allocation9 + $0x120] sm:$0xff]
          %v468 = vld [vmem:[#allocation9 + $0x128] sm:$0xff]
          %v469 = vld [vmem:[#allocation9 + $0x130] sm:$0xff]
          %v470 = vld [vmem:[#allocation9 + $0x138] sm:$0xff]
          %v471 = vld [vmem:[#allocation9 + $0x140] sm:$0xff]
          %v472 = vld [vmem:[#allocation9 + $0x148] sm:$0xff]
          %v473 = vld [vmem:[#allocation9 + $0x150] sm:$0xff]
          %v474 = vld [vmem:[#allocation9 + $0x158] sm:$0xff]
          %v475 = vld [vmem:[#allocation9 + $0x160] sm:$0xff]
          %v476 = vld [vmem:[#allocation9 + $0x168] sm:$0xff]
          %v477 = vld [vmem:[#allocation9 + $0x170] sm:$0xff]
          %v478 = vld [vmem:[#allocation9 + $0x178] sm:$0xff]
          %v479 = vld [vmem:[#allocation4] sm:$0xff]
          %480 = vmatprep.subr.mxu0 %v432
          %481 = vmatpush1.msra.mxu0 %v431
          %482 = vmatprep.subr.mxu0 %v435
          %483 = vmatpush1.msra.mxu0 %v434
          %484 = vmatprep.subr.mxu0 %v438
          %485 = vmatpush1.msra.mxu0 %v437
          %486 = vmatprep.subr.mxu0 %v441
          %487 = vmatpush1.msra.mxu0 %v440
          %488 = vmatprep.subr.mxu0 %v444
          %489 = vmatpush1.msra.mxu0 %v443
          %490 = vmatprep.subr.mxu0 %v447
          %491 = vmatpush1.msra.mxu0 %v446
          %492 = vmatprep.subr.mxu0 %v450
          %493 = vmatpush1.msra.mxu0 %v449
          %494 = vmatprep.subr.mxu0 %v453
          %495 = vmatpush1.msra.mxu0 %v452
          %496 = vmatprep.subr.mxu0 %v456
          %497 = vmatpush1.msra.mxu0 %v455
          %498 = vmatprep.subr.mxu0 %v459
          %499 = vmatpush1.msra.mxu0 %v458
          %500 = vmatprep.subr.mxu0 %v462
          %501 = vmatpush1.msra.mxu0 %v461
          %502 = vmatprep.subr.mxu0 %v465
          %503 = vmatpush1.msra.mxu0 %v464
          %504 = vmatprep.subr.mxu0 %v468
          %505 = vmatpush1.msra.mxu0 %v467
          %506 = vmatprep.subr.mxu0 %v471
          %507 = vmatpush1.msra.mxu0 %v470
          %508 = vmatprep.subr.mxu0 %v474
          %509 = vmatpush1.msra.mxu0 %v473
          %510 = vmatprep.subr.mxu0 %v477
          %511 = vmatpush1.msra.mxu0 %v476
          %512 = vmatprep.subr.mxu0 0.0
          %513 = vmatpush1.msra.mxu0 0.0
          %514 = vmatprep.subr.mxu0 0.0
          %515 = vmatpush1.msra.mxu0 0.0
          %516 = vmatprep.subr.mxu0 0.0
          %517 = vmatpush1.msra.mxu0 0.0
          %518 = vmatprep.subr.mxu0 0.0
          %519 = vmatpush1.msra.mxu0 0.0
          %520 = vmatprep.subr.mxu0 0.0
          %521 = vmatpush1.msra.mxu0 0.0
          %522 = vmatprep.subr.mxu0 0.0
          %523 = vmatpush1.msra.mxu0 0.0
          %524 = vmatprep.subr.mxu0 0.0
          %525 = vmatpush1.msra.mxu0 0.0
          %526 = vmatprep.subr.mxu0 0.0
          %527 = vmatpush1.msra.mxu0 0.0
          %528 = vmatprep.subr.mxu0 0.0
          %529 = vmatpush1.msra.mxu0 0.0
          %530 = vmatprep.subr.mxu0 0.0
          %531 = vmatpush1.msra.mxu0 0.0
          %532 = vmatprep.subr.mxu0 0.0
          %533 = vmatpush1.msra.mxu0 0.0
          %534 = vmatprep.subr.mxu0 0.0
          %535 = vmatpush1.msra.mxu0 0.0
          %536 = vmatprep.subr.mxu0 0.0
          %537 = vmatpush1.msra.mxu0 0.0
          %538 = vmatprep.subr.mxu0 0.0
          %539 = vmatpush1.msra.mxu0 0.0
          %540 = vmatprep.subr.mxu0 0.0
          %541 = vmatpush1.msra.mxu0 0.0
          %542 = vmatprep.subr.mxu0 0.0
          %543 = vmatpush1.msra.mxu0 0.0
          %544 = vmatprep.mubr.f32.mxu0 0.0
          %545 = vmatmul.mubr.f32.gmra.mrb[0].mxu0 %v479
          %v546 = vpop.f32.mrb[0].mxu0
          %v547 = vadd.f32 0.0, %v546
          %v548 = vpop.f32.mrb[0].mxu0
          %v549 = vadd.f32 0.0, %v548
          %550 = vdwg.mxu0
          %551 = vmatprep.subr.mxu0 0.0
          %552 = vmatpush1.msra.mxu0 %v433
          %553 = vmatprep.subr.mxu0 0.0
          %554 = vmatpush1.msra.mxu0 %v436
          %555 = vmatprep.subr.mxu0 0.0
          %556 = vmatpush1.msra.mxu0 %v439
          %557 = vmatprep.subr.mxu0 0.0
          %558 = vmatpush1.msra.mxu0 %v442
          %559 = vmatprep.subr.mxu0 0.0
          %560 = vmatpush1.msra.mxu0 %v445
          %561 = vmatprep.subr.mxu0 0.0
          %562 = vmatpush1.msra.mxu0 %v448
          %563 = vmatprep.subr.mxu0 0.0
          %564 = vmatpush1.msra.mxu0 %v451
          %565 = vmatprep.subr.mxu0 0.0
          %566 = vmatpush1.msra.mxu0 %v454
          %567 = vmatprep.subr.mxu0 0.0
          %568 = vmatpush1.msra.mxu0 %v457
          %569 = vmatprep.subr.mxu0 0.0
          %570 = vmatpush1.msra.mxu0 %v460
          %571 = vmatprep.subr.mxu0 0.0
          %572 = vmatpush1.msra.mxu0 %v463
          %573 = vmatprep.subr.mxu0 0.0
          %574 = vmatpush1.msra.mxu0 %v466
          %575 = vmatprep.subr.mxu0 0.0
          %576 = vmatpush1.msra.mxu0 %v469
          %577 = vmatprep.subr.mxu0 0.0
          %578 = vmatpush1.msra.mxu0 %v472
          %579 = vmatprep.subr.mxu0 0.0
          %580 = vmatpush1.msra.mxu0 %v475
          %581 = vmatprep.subr.mxu0 0.0
          %582 = vmatpush1.msra.mxu0 %v478
          %583 = vmatprep.subr.mxu0 0.0
          %584 = vmatpush1.msra.mxu0 0.0
          %585 = vmatprep.subr.mxu0 0.0
          %586 = vmatpush1.msra.mxu0 0.0
          %587 = vmatprep.subr.mxu0 0.0
          %588 = vmatpush1.msra.mxu0 0.0
          %589 = vmatprep.subr.mxu0 0.0
          %590 = vmatpush1.msra.mxu0 0.0
          %591 = vmatprep.subr.mxu0 0.0
          %592 = vmatpush1.msra.mxu0 0.0
          %593 = vmatprep.subr.mxu0 0.0
          %594 = vmatpush1.msra.mxu0 0.0
          %595 = vmatprep.subr.mxu0 0.0
          %596 = vmatpush1.msra.mxu0 0.0
          %597 = vmatprep.subr.mxu0 0.0
          %598 = vmatpush1.msra.mxu0 0.0
          %599 = vmatprep.subr.mxu0 0.0
          %600 = vmatpush1.msra.mxu0 0.0
          %601 = vmatprep.subr.mxu0 0.0
          %602 = vmatpush1.msra.mxu0 0.0
          %603 = vmatprep.subr.mxu0 0.0
          %604 = vmatpush1.msra.mxu0 0.0
          %605 = vmatprep.subr.mxu0 0.0
          %606 = vmatpush1.msra.mxu0 0.0
          %607 = vmatprep.subr.mxu0 0.0
          %608 = vmatpush1.msra.mxu0 0.0
          %609 = vmatprep.subr.mxu0 0.0
          %610 = vmatpush1.msra.mxu0 0.0
          %611 = vmatprep.subr.mxu0 0.0
          %612 = vmatpush1.msra.mxu0 0.0
          %613 = vmatprep.subr.mxu0 0.0
          %614 = vmatpush1.msra.mxu0 0.0
          %615 = vmatprep.mubr.f32.mxu0 0.0
          %616 = vmatmul.mubr.f32.gmra.mrb[0].mxu0 %v479
          %v617 = vpop.f32.mrb[0].mxu0
          %v618 = vadd.f32 0.0, %v617
          %v619 = vpop.f32.mrb[0].mxu0
          %620 = vdwg.mxu0
          %621 = vst [vmem:[#allocation3] sm:$0xff] %v547
          %622 = vst [vmem:[#allocation3 + $0x8] sm:$0xff] %v549
          %623 = vst [vmem:[#allocation3 + $0x10] sm:$0xff] %v618
        $region68: #{tpu_custom_call.1} parent=43 // pred_fallthru
          _
        %p624 = scmp.ne.s32.totalorder %s32, 0
        // Predicated region
        $region69: #{tpu_custom_call.1} parent=43 // pred_check
          %p625 = pneg %p624
        $region70: #{tpu_custom_call.1} parent=43 // pred_check_branch
          %627 = sbr.rel (%p625) target = $region72
        $region71: #{tpu_custom_call.1} parent=43 // pred_region
          %v628 = vld [vmem:[#allocation2] sm:$0xff]
          %v629 = vld [vmem:[%s366] sm:$0xff]
          %v630 = vld [vmem:[%s366 + $0x8] sm:$0xff]
          %v631 = vld [vmem:[%s366 + $0x10] sm:$0xff]
          %v632 = vld [vmem:[%s366 + $0x18] sm:$0xff]
          %v633 = vld [vmem:[%s366 + $0x20] sm:$0xff]
          %v634 = vld [vmem:[%s366 + $0x28] sm:$0xff]
          %v635 = vld [vmem:[%s366 + $0x30] sm:$0xff]
          %v636 = vld [vmem:[%s366 + $0x38] sm:$0xff]
          %v637 = vld [vmem:[%s366 + $0x40] sm:$0xff]
          %v638 = vld [vmem:[%s366 + $0x48] sm:$0xff]
          %v639 = vld [vmem:[%s366 + $0x50] sm:$0xff]
          %v640 = vld [vmem:[%s366 + $0x58] sm:$0xff]
          %v641 = vld [vmem:[%s366 + $0x60] sm:$0xff]
          %v642 = vld [vmem:[%s366 + $0x68] sm:$0xff]
          %v643 = vld [vmem:[%s366 + $0x70] sm:$0xff]
          %v644 = vld [vmem:[%s366 + $0x78] sm:$0xff]
          %v645 = vld [vmem:[%s366 + $0x80] sm:$0xff]
          %v646 = vld [vmem:[%s366 + $0x88] sm:$0xff]
          %v647 = vld [vmem:[%s366 + $0x90] sm:$0xff]
          %v648 = vld [vmem:[%s366 + $0x98] sm:$0xff]
          %v649 = vld [vmem:[%s366 + $0xa0] sm:$0xff]
          %v650 = vld [vmem:[%s366 + $0xa8] sm:$0xff]
          %v651 = vld [vmem:[%s366 + $0xb0] sm:$0xff]
          %v652 = vld [vmem:[%s366 + $0xb8] sm:$0xff]
          %v653 = vld [vmem:[%s366 + $0xc0] sm:$0xff]
          %v654 = vld [vmem:[%s366 + $0xc8] sm:$0xff]
          %v655 = vld [vmem:[%s366 + $0xd0] sm:$0xff]
          %v656 = vld [vmem:[%s366 + $0xd8] sm:$0xff]
          %v657 = vld [vmem:[%s366 + $0xe0] sm:$0xff]
          %v658 = vld [vmem:[%s366 + $0xe8] sm:$0xff]
          %v659 = vld [vmem:[%s366 + $0xf0] sm:$0xff]
          %v660 = vld [vmem:[%s366 + $0xf8] sm:$0xff]
          %v661 = vld [vmem:[%s366 + $0x100] sm:$0xff]
          %v662 = vld [vmem:[%s366 + $0x108] sm:$0xff]
          %v663 = vld [vmem:[%s366 + $0x110] sm:$0xff]
          %v664 = vld [vmem:[%s366 + $0x118] sm:$0xff]
          %v665 = vld [vmem:[%s366 + $0x120] sm:$0xff]
          %v666 = vld [vmem:[%s366 + $0x128] sm:$0xff]
          %v667 = vld [vmem:[%s366 + $0x130] sm:$0xff]
          %v668 = vld [vmem:[%s366 + $0x138] sm:$0xff]
          %v669 = vld [vmem:[%s366 + $0x140] sm:$0xff]
          %v670 = vld [vmem:[%s366 + $0x148] sm:$0xff]
          %v671 = vld [vmem:[%s366 + $0x150] sm:$0xff]
          %v672 = vld [vmem:[%s366 + $0x158] sm:$0xff]
          %v673 = vld [vmem:[%s366 + $0x160] sm:$0xff]
          %v674 = vld [vmem:[%s366 + $0x168] sm:$0xff]
          %v675 = vld [vmem:[%s366 + $0x170] sm:$0xff]
          %v676 = vld [vmem:[%s366 + $0x178] sm:$0xff]
          %677 = vmatprep.subr.mxu0 %v630
          %678 = vmatpush1.msra.mxu0 %v629
          %679 = vmatprep.subr.mxu0 %v633
          %680 = vmatpush1.msra.mxu0 %v632
          %681 = vmatprep.subr.mxu0 %v636
          %682 = vmatpush1.msra.mxu0 %v635
          %683 = vmatprep.subr.mxu0 %v639
          %684 = vmatpush1.msra.mxu0 %v638
          %685 = vmatprep.subr.mxu0 %v642
          %686 = vmatpush1.msra.mxu0 %v641
          %687 = vmatprep.subr.mxu0 %v645
          %688 = vmatpush1.msra.mxu0 %v644
          %689 = vmatprep.subr.mxu0 %v648
          %690 = vmatpush1.msra.mxu0 %v647
          %691 = vmatprep.subr.mxu0 %v651
          %692 = vmatpush1.msra.mxu0 %v650
          %693 = vmatprep.subr.mxu0 %v654
          %694 = vmatpush1.msra.mxu0 %v653
          %695 = vmatprep.subr.mxu0 %v657
          %696 = vmatpush1.msra.mxu0 %v656
          %697 = vmatprep.subr.mxu0 %v660
          %698 = vmatpush1.msra.mxu0 %v659
          %699 = vmatprep.subr.mxu0 %v663
          %700 = vmatpush1.msra.mxu0 %v662
          %701 = vmatprep.subr.mxu0 %v666
          %702 = vmatpush1.msra.mxu0 %v665
          %703 = vmatprep.subr.mxu0 %v669
          %704 = vmatpush1.msra.mxu0 %v668
          %705 = vmatprep.subr.mxu0 %v672
          %706 = vmatpush1.msra.mxu0 %v671
          %707 = vmatprep.subr.mxu0 %v675
          %708 = vmatpush1.msra.mxu0 %v674
          %709 = vmatprep.subr.mxu0 0.0
          %710 = vmatpush1.msra.mxu0 0.0
          %711 = vmatprep.subr.mxu0 0.0
          %712 = vmatpush1.msra.mxu0 0.0
          %713 = vmatprep.subr.mxu0 0.0
          %714 = vmatpush1.msra.mxu0 0.0
          %715 = vmatprep.subr.mxu0 0.0
          %716 = vmatpush1.msra.mxu0 0.0
          %717 = vmatprep.subr.mxu0 0.0
          %718 = vmatpush1.msra.mxu0 0.0
          %719 = vmatprep.subr.mxu0 0.0
          %720 = vmatpush1.msra.mxu0 0.0
          %721 = vmatprep.subr.mxu0 0.0
          %722 = vmatpush1.msra.mxu0 0.0
          %723 = vmatprep.subr.mxu0 0.0
          %724 = vmatpush1.msra.mxu0 0.0
          %725 = vmatprep.subr.mxu0 0.0
          %726 = vmatpush1.msra.mxu0 0.0
          %727 = vmatprep.subr.mxu0 0.0
          %728 = vmatpush1.msra.mxu0 0.0
          %729 = vmatprep.subr.mxu0 0.0
          %730 = vmatpush1.msra.mxu0 0.0
          %731 = vmatprep.subr.mxu0 0.0
          %732 = vmatpush1.msra.mxu0 0.0
          %733 = vmatprep.subr.mxu0 0.0
          %734 = vmatpush1.msra.mxu0 0.0
          %735 = vmatprep.subr.mxu0 0.0
          %736 = vmatpush1.msra.mxu0 0.0
          %737 = vmatprep.subr.mxu0 0.0
          %738 = vmatpush1.msra.mxu0 0.0
          %739 = vmatprep.subr.mxu0 0.0
          %740 = vmatpush1.msra.mxu0 0.0
          %741 = vmatprep.mubr.f32.mxu0 0.0
          %742 = vmatmul.mubr.f32.gmra.mrb[0].mxu0 %v628
          %v743 = vpop.f32.mrb[0].mxu0
          %v744 = vadd.f32 0.0, %v743
          %v745 = vpop.f32.mrb[0].mxu0
          %v746 = vadd.f32 0.0, %v745
          %747 = vdwg.mxu0
          %748 = vmatprep.subr.mxu0 0.0
          %749 = vmatpush1.msra.mxu0 %v631
          %750 = vmatprep.subr.mxu0 0.0
          %751 = vmatpush1.msra.mxu0 %v634
          %752 = vmatprep.subr.mxu0 0.0
          %753 = vmatpush1.msra.mxu0 %v637
          %754 = vmatprep.subr.mxu0 0.0
          %755 = vmatpush1.msra.mxu0 %v640
          %756 = vmatprep.subr.mxu0 0.0
          %757 = vmatpush1.msra.mxu0 %v643
          %758 = vmatprep.subr.mxu0 0.0
          %759 = vmatpush1.msra.mxu0 %v646
          %760 = vmatprep.subr.mxu0 0.0
          %761 = vmatpush1.msra.mxu0 %v649
          %762 = vmatprep.subr.mxu0 0.0
          %763 = vmatpush1.msra.mxu0 %v652
          %764 = vmatprep.subr.mxu0 0.0
          %765 = vmatpush1.msra.mxu0 %v655
          %766 = vmatprep.subr.mxu0 0.0
          %767 = vmatpush1.msra.mxu0 %v658
          %768 = vmatprep.subr.mxu0 0.0
          %769 = vmatpush1.msra.mxu0 %v661
          %770 = vmatprep.subr.mxu0 0.0
          %771 = vmatpush1.msra.mxu0 %v664
          %772 = vmatprep.subr.mxu0 0.0
          %773 = vmatpush1.msra.mxu0 %v667
          %774 = vmatprep.subr.mxu0 0.0
          %775 = vmatpush1.msra.mxu0 %v670
          %776 = vmatprep.subr.mxu0 0.0
          %777 = vmatpush1.msra.mxu0 %v673
          %778 = vmatprep.subr.mxu0 0.0
          %779 = vmatpush1.msra.mxu0 %v676
          %780 = vmatprep.subr.mxu0 0.0
          %781 = vmatpush1.msra.mxu0 0.0
          %782 = vmatprep.subr.mxu0 0.0
          %783 = vmatpush1.msra.mxu0 0.0
          %784 = vmatprep.subr.mxu0 0.0
          %785 = vmatpush1.msra.mxu0 0.0
          %786 = vmatprep.subr.mxu0 0.0
          %787 = vmatpush1.msra.mxu0 0.0
          %788 = vmatprep.subr.mxu0 0.0
          %789 = vmatpush1.msra.mxu0 0.0
          %790 = vmatprep.subr.mxu0 0.0
          %791 = vmatpush1.msra.mxu0 0.0
          %792 = vmatprep.subr.mxu0 0.0
          %793 = vmatpush1.msra.mxu0 0.0
          %794 = vmatprep.subr.mxu0 0.0
          %795 = vmatpush1.msra.mxu0 0.0
          %796 = vmatprep.subr.mxu0 0.0
          %797 = vmatpush1.msra.mxu0 0.0
          %798 = vmatprep.subr.mxu0 0.0
          %799 = vmatpush1.msra.mxu0 0.0
          %800 = vmatprep.subr.mxu0 0.0
          %801 = vmatpush1.msra.mxu0 0.0
          %802 = vmatprep.subr.mxu0 0.0
          %803 = vmatpush1.msra.mxu0 0.0
          %804 = vmatprep.subr.mxu0 0.0
          %805 = vmatpush1.msra.mxu0 0.0
          %806 = vmatprep.subr.mxu0 0.0
          %807 = vmatpush1.msra.mxu0 0.0
          %808 = vmatprep.subr.mxu0 0.0
          %809 = vmatpush1.msra.mxu0 0.0
          %810 = vmatprep.subr.mxu0 0.0
          %811 = vmatpush1.msra.mxu0 0.0
          %812 = vmatprep.mubr.f32.mxu0 0.0
          %813 = vmatmul.mubr.f32.gmra.mrb[0].mxu0 %v628
          %v814 = vpop.f32.mrb[0].mxu0
          %v815 = vadd.f32 0.0, %v814
          %v816 = vpop.f32.mrb[0].mxu0
          %817 = vdwg.mxu0
          %818 = vst [vmem:[#allocation3] sm:$0xff] %v744
          %819 = vst [vmem:[#allocation3 + $0x8] sm:$0xff] %v746
          %820 = vst [vmem:[#allocation3 + $0x10] sm:$0xff] %v815
        $region72: #{tpu_custom_call.1} parent=43 // pred_fallthru
          _
        %v821 = vld [vmem:[%s353] sm:$0xff]
        %v822 = vld [vmem:[%s375] sm:$0xff]
        %v823 = vld [vmem:[%s375 + $0x8] sm:$0xff]
        %v824 = vld [vmem:[%s375 + $0x10] sm:$0xff]
        %v825 = vld [vmem:[%s375 + $0x18] sm:$0xff]
        %v826 = vld [vmem:[%s375 + $0x20] sm:$0xff]
        %v827 = vld [vmem:[%s375 + $0x28] sm:$0xff]
        %v828 = vld [vmem:[%s375 + $0x30] sm:$0xff]
        %v829 = vld [vmem:[%s375 + $0x38] sm:$0xff]
        %v830 = vld [vmem:[%s375 + $0x40] sm:$0xff]
        %v831 = vld [vmem:[%s375 + $0x48] sm:$0xff]
        %v832 = vld [vmem:[%s375 + $0x50] sm:$0xff]
        %v833 = vld [vmem:[%s375 + $0x58] sm:$0xff]
        %v834 = vld [vmem:[%s375 + $0x60] sm:$0xff]
        %v835 = vld [vmem:[%s375 + $0x68] sm:$0xff]
        %v836 = vld [vmem:[%s375 + $0x70] sm:$0xff]
        %v837 = vld [vmem:[%s375 + $0x78] sm:$0xff]
        %v838 = vld [vmem:[%s375 + $0x80] sm:$0xff]
        %v839 = vld [vmem:[%s375 + $0x88] sm:$0xff]
        %v840 = vld [vmem:[%s375 + $0x90] sm:$0xff]
        %v841 = vld [vmem:[%s375 + $0x98] sm:$0xff]
        %v842 = vld [vmem:[%s375 + $0xa0] sm:$0xff]
        %v843 = vld [vmem:[%s375 + $0xa8] sm:$0xff]
        %v844 = vld [vmem:[%s375 + $0xb0] sm:$0xff]
        %v845 = vld [vmem:[%s375 + $0xb8] sm:$0xff]
        %v846 = vld [vmem:[%s375 + $0xc0] sm:$0xff]
        %v847 = vld [vmem:[%s375 + $0xc8] sm:$0xff]
        %v848 = vld [vmem:[%s375 + $0xd0] sm:$0xff]
        %v849 = vld [vmem:[%s375 + $0xd8] sm:$0xff]
        %v850 = vld [vmem:[%s375 + $0xe0] sm:$0xff]
        %v851 = vld [vmem:[%s375 + $0xe8] sm:$0xff]
        %v852 = vld [vmem:[%s375 + $0xf0] sm:$0xff]
        %v853 = vld [vmem:[%s375 + $0xf8] sm:$0xff]
        %v854 = vld [vmem:[%s375 + $0x100] sm:$0xff]
        %v855 = vld [vmem:[%s375 + $0x108] sm:$0xff]
        %v856 = vld [vmem:[%s375 + $0x110] sm:$0xff]
        %v857 = vld [vmem:[%s375 + $0x118] sm:$0xff]
        %v858 = vld [vmem:[%s375 + $0x120] sm:$0xff]
        %v859 = vld [vmem:[%s375 + $0x128] sm:$0xff]
        %v860 = vld [vmem:[%s375 + $0x130] sm:$0xff]
        %v861 = vld [vmem:[%s375 + $0x138] sm:$0xff]
        %v862 = vld [vmem:[%s375 + $0x140] sm:$0xff]
        %v863 = vld [vmem:[%s375 + $0x148] sm:$0xff]
        %v864 = vld [vmem:[%s375 + $0x150] sm:$0xff]
        %v865 = vld [vmem:[%s375 + $0x158] sm:$0xff]
        %v866 = vld [vmem:[%s375 + $0x160] sm:$0xff]
        %v867 = vld [vmem:[%s375 + $0x168] sm:$0xff]
        %v868 = vld [vmem:[%s375 + $0x170] sm:$0xff]
        %v869 = vld [vmem:[%s375 + $0x178] sm:$0xff]
        %v870 = vld [vmem:[#allocation3] sm:$0xff]
        %v871 = vld [vmem:[#allocation3 + $0x8] sm:$0xff]
        %v872 = vld [vmem:[#allocation3 + $0x10] sm:$0xff]
        %v873 = vld [vmem:[%s426] ss:$2 sm:$0x7]
        %v875 = vlaneseq
        %v876 = vshrl.u32 %v875, 7
        %v877 = vsub.s32 0, %v876
        %v878 = vrot.slane %v873, %v877
        %v879 = vlaneseq
        %v880 = vshrl.u32 %v879, 7
        %v881 = vsub.s32 1, %v880
        %v882 = vrot.slane %v873, %v881
        %v883 = vlaneseq
        %v884 = vshrl.u32 %v883, 7
        %v885 = vsub.s32 2, %v884
        %v886 = vrot.slane %v873, %v885
        %v890 = vadd.f32 %v870, %v878
        %v891 = vadd.f32 %v871, %v882
        %v892 = vadd.f32 %v872, %v886
        %s893 = scalar_lea.vmem %s426, 1
        %v894 = vld [vmem:[%s893] ss:$2 sm:$0x7]
        %v896 = vlaneseq
        %v897 = vshrl.u32 %v896, 7
        %v898 = vsub.s32 0, %v897
        %v899 = vrot.slane %v894, %v898
        %v900 = vlaneseq
        %v901 = vshrl.u32 %v900, 7
        %v902 = vsub.s32 1, %v901
        %v903 = vrot.slane %v894, %v902
        %v904 = vlaneseq
        %v905 = vshrl.u32 %v904, 7
        %v906 = vsub.s32 2, %v905
        %v907 = vrot.slane %v894, %v906
        %911 = vmatprep.subr.mxu0 %v823
        %912 = vmatpush1.msra.mxu0 %v822
        %913 = vmatprep.subr.mxu0 %v826
        %914 = vmatpush1.msra.mxu0 %v825
        %915 = vmatprep.subr.mxu0 %v829
        %916 = vmatpush1.msra.mxu0 %v828
        %917 = vmatprep.subr.mxu0 %v832
        %918 = vmatpush1.msra.mxu0 %v831
        %919 = vmatprep.subr.mxu0 %v835
        %920 = vmatpush1.msra.mxu0 %v834
        %921 = vmatprep.subr.mxu0 %v838
        %922 = vmatpush1.msra.mxu0 %v837
        %923 = vmatprep.subr.mxu0 %v841
        %924 = vmatpush1.msra.mxu0 %v840
        %925 = vmatprep.subr.mxu0 %v844
        %926 = vmatpush1.msra.mxu0 %v843
        %927 = vmatprep.subr.mxu0 %v847
        %928 = vmatpush1.msra.mxu0 %v846
        %929 = vmatprep.subr.mxu0 %v850
        %930 = vmatpush1.msra.mxu0 %v849
        %931 = vmatprep.subr.mxu0 %v853
        %932 = vmatpush1.msra.mxu0 %v852
        %933 = vmatprep.subr.mxu0 %v856
        %934 = vmatpush1.msra.mxu0 %v855
        %935 = vmatprep.subr.mxu0 %v859
        %936 = vmatpush1.msra.mxu0 %v858
        %937 = vmatprep.subr.mxu0 %v862
        %938 = vmatpush1.msra.mxu0 %v861
        %939 = vmatprep.subr.mxu0 %v865
        %940 = vmatpush1.msra.mxu0 %v864
        %941 = vmatprep.subr.mxu0 %v868
        %942 = vmatpush1.msra.mxu0 %v867
        %943 = vmatprep.subr.mxu0 0.0
        %944 = vmatpush1.msra.mxu0 0.0
        %945 = vmatprep.subr.mxu0 0.0
        %946 = vmatpush1.msra.mxu0 0.0
        %947 = vmatprep.subr.mxu0 0.0
        %948 = vmatpush1.msra.mxu0 0.0
        %949 = vmatprep.subr.mxu0 0.0
        %950 = vmatpush1.msra.mxu0 0.0
        %951 = vmatprep.subr.mxu0 0.0
        %952 = vmatpush1.msra.mxu0 0.0
        %953 = vmatprep.subr.mxu0 0.0
        %954 = vmatpush1.msra.mxu0 0.0
        %955 = vmatprep.subr.mxu0 0.0
        %956 = vmatpush1.msra.mxu0 0.0
        %957 = vmatprep.subr.mxu0 0.0
        %958 = vmatpush1.msra.mxu0 0.0
        %959 = vmatprep.subr.mxu0 0.0
        %960 = vmatpush1.msra.mxu0 0.0
        %961 = vmatprep.subr.mxu0 0.0
        %962 = vmatpush1.msra.mxu0 0.0
        %963 = vmatprep.subr.mxu0 0.0
        %964 = vmatpush1.msra.mxu0 0.0
        %965 = vmatprep.subr.mxu0 0.0
        %966 = vmatpush1.msra.mxu0 0.0
        %967 = vmatprep.subr.mxu0 0.0
        %968 = vmatpush1.msra.mxu0 0.0
        %969 = vmatprep.subr.mxu0 0.0
        %970 = vmatpush1.msra.mxu0 0.0
        %971 = vmatprep.subr.mxu0 0.0
        %972 = vmatpush1.msra.mxu0 0.0
        %973 = vmatprep.subr.mxu0 0.0
        %974 = vmatpush1.msra.mxu0 0.0
        %975 = vmatprep.mubr.f32.mxu0 0.0
        %976 = vmatmul.mubr.f32.gmra.mrb[0].mxu0 %v821
        %v977 = vpop.f32.mrb[0].mxu0
        %v978 = vadd.f32 %v899, %v977
        %v979 = vpop.f32.mrb[0].mxu0
        %v980 = vadd.f32 %v903, %v979
        %981 = vdwg.mxu0
        %982 = vmatprep.subr.mxu0 0.0
        %983 = vmatpush1.msra.mxu0 %v824
        %984 = vmatprep.subr.mxu0 0.0
        %985 = vmatpush1.msra.mxu0 %v827
        %986 = vmatprep.subr.mxu0 0.0
        %987 = vmatpush1.msra.mxu0 %v830
        %988 = vmatprep.subr.mxu0 0.0
        %989 = vmatpush1.msra.mxu0 %v833
        %990 = vmatprep.subr.mxu0 0.0
        %991 = vmatpush1.msra.mxu0 %v836
        %992 = vmatprep.subr.mxu0 0.0
        %993 = vmatpush1.msra.mxu0 %v839
        %994 = vmatprep.subr.mxu0 0.0
        %995 = vmatpush1.msra.mxu0 %v842
        %996 = vmatprep.subr.mxu0 0.0
        %997 = vmatpush1.msra.mxu0 %v845
        %998 = vmatprep.subr.mxu0 0.0
        %999 = vmatpush1.msra.mxu0 %v848
        %1000 = vmatprep.subr.mxu0 0.0
        %1001 = vmatpush1.msra.mxu0 %v851
        %1002 = vmatprep.subr.mxu0 0.0
        %1003 = vmatpush1.msra.mxu0 %v854
        %1004 = vmatprep.subr.mxu0 0.0
        %1005 = vmatpush1.msra.mxu0 %v857
        %1006 = vmatprep.subr.mxu0 0.0
        %1007 = vmatpush1.msra.mxu0 %v860
        %1008 = vmatprep.subr.mxu0 0.0
        %1009 = vmatpush1.msra.mxu0 %v863
        %1010 = vmatprep.subr.mxu0 0.0
        %1011 = vmatpush1.msra.mxu0 %v866
        %1012 = vmatprep.subr.mxu0 0.0
        %1013 = vmatpush1.msra.mxu0 %v869
        %1014 = vmatprep.subr.mxu0 0.0
        %1015 = vmatpush1.msra.mxu0 0.0
        %1016 = vmatprep.subr.mxu0 0.0
        %1017 = vmatpush1.msra.mxu0 0.0
        %1018 = vmatprep.subr.mxu0 0.0
        %1019 = vmatpush1.msra.mxu0 0.0
        %1020 = vmatprep.subr.mxu0 0.0
        %1021 = vmatpush1.msra.mxu0 0.0
        %1022 = vmatprep.subr.mxu0 0.0
        %1023 = vmatpush1.msra.mxu0 0.0
        %1024 = vmatprep.subr.mxu0 0.0
        %1025 = vmatpush1.msra.mxu0 0.0
        %1026 = vmatprep.subr.mxu0 0.0
        %1027 = vmatpush1.msra.mxu0 0.0
        %1028 = vmatprep.subr.mxu0 0.0
        %1029 = vmatpush1.msra.mxu0 0.0
        %1030 = vmatprep.subr.mxu0 0.0
        %1031 = vmatpush1.msra.mxu0 0.0
        %1032 = vmatprep.subr.mxu0 0.0
        %1033 = vmatpush1.msra.mxu0 0.0
        %1034 = vmatprep.subr.mxu0 0.0
        %1035 = vmatpush1.msra.mxu0 0.0
        %1036 = vmatprep.subr.mxu0 0.0
        %1037 = vmatpush1.msra.mxu0 0.0
        %1038 = vmatprep.subr.mxu0 0.0
        %1039 = vmatpush1.msra.mxu0 0.0
        %1040 = vmatprep.subr.mxu0 0.0
        %1041 = vmatpush1.msra.mxu0 0.0
        %1042 = vmatprep.subr.mxu0 0.0
        %1043 = vmatpush1.msra.mxu0 0.0
        %1044 = vmatprep.subr.mxu0 0.0
        %1045 = vmatpush1.msra.mxu0 0.0
        %1046 = vmatprep.mubr.f32.mxu0 0.0
        %1047 = vmatmul.mubr.f32.gmra.mrb[0].mxu0 %v821
        %v1048 = vpop.f32.mrb[0].mxu0
        %v1049 = vadd.f32 %v907, %v1048
        %v1050 = vpop.f32.mrb[0].mxu0
        %1051 = vdwg.mxu0
        %v1052 = vadd.f32 %v890, %v978
        %v1053 = vxor.u32 %v1052, 2147483648
        %v1054 = vmul.f32 %v1053, 1.442695
        %v1055 = vpow.pop %v1054
        %v1056 = vadd.f32 %v1055, 1.0
        %v1057 = vrcp.pop %v1056
        %v1058 = vmul.f32 1.0, %v1057
        %v1059 = vadd.f32 %v891, %v980
        %v1060 = vxor.u32 %v1059, 2147483648
        %v1061 = vmul.f32 %v1060, 1.442695
        %v1062 = vpow.pop %v1061
        %v1063 = vadd.f32 %v1062, 1.0
        %v1064 = vrcp.pop %v1063
        %v1065 = vmul.f32 1.0, %v1064
        %v1066 = vmul.f32 %v1058, %v1049
        %v1067 = vadd.f32 %v892, %v1066
        %v1068 = vtanh.pop %v1067
        %v1069 = vsub.f32 %v821, %v1068
        %v1070 = vmul.f32 %v1065, %v1069
        %v1071 = vadd.f32 %v1068, %v1070
        %1072 = vst [vmem:[%s418] sm:$0xff] %v1071
        %s1073 = sadd.s32 %s32, 1
        %p1074 = scmp.lt.s32.totalorder %s1073, 3
        // Predicated region
        $region73: #{tpu_custom_call.1} parent=43 // pred_check
          %p1075 = pneg %p1074
        $region74: #{tpu_custom_call.1} parent=43 // pred_check_branch
          %1077 = sbr.rel (%p1075) target = $region76
        $region75: #{tpu_custom_call.1} parent=43 // pred_region
          %1078 = vst [vmem:[#allocation2] sm:$0xff] %v1071
        $region76: #{tpu_custom_call.1} parent=43 // pred_fallthru
          _
        %s1079 = sand.u32 %s208, 1
        %s1080 = scalar_lea.sflag [#allocation6], %s1079
        %s1081 = sand.u32 %s208, 1
        %s1082 = smul.addr %s1081, 8
        %s1083 = scalar_lea.vmem [#allocation13], %s1082
        // Predicated region
        $region77: #{tpu_custom_call.1} parent=43 // pred_check
          %p1084 = pneg %p218
        $region78: #{tpu_custom_call.1} parent=43 // pred_check_branch
          %1086 = sbr.rel (%p1084) target = $region80
        $region79: #{tpu_custom_call.1} parent=43 // pred_region
          %s1088 = ssub.s32 128, 128
          %1089 = vsyncadd %s1080, %s1088
          %s1090 = sadd.s32 %s31, %s32
          %s1091 = smul.addr %s1090, 128
          %s1092 = scalar_lea.hbm %s6, %s1091
          %s1094 = sshll.u32 %s1083, 4
          %s1095 = int_to_ptr.vmem [resolvable:$true] %s1094
          %1097 = dma.vmem_to_hbm [thread:$0]  %s1095, 128, %s1092, %s1080
        $region80: #{tpu_custom_call.1} parent=43 // pred_fallthru
          _
      $region44: #{tpu_custom_call.1} parent=5 // pred_fallthru
        _
      %p1098 = scmp.le.s32.totalorder 2, %s22
      // Predicated region
      $region81: #{tpu_custom_call.1} parent=5 // pred_check
        %p1099 = pneg %p1098
      $region82: #{tpu_custom_call.1} parent=5 // pred_check_branch
        %1101 = sbr.rel (%p1099) target = $region84
      $region83: #{tpu_custom_call.1} parent=5 // pred_region
        %s1102 = ssub.s32 %s22, 2
        // Predicated region
        $region85: #{tpu_custom_call.1} parent=83 // pred_check
          %p1103 = pneg %p224
        $region86: #{tpu_custom_call.1} parent=83 // pred_check_branch
          %1105 = sbr.rel (%p1103) target = $region88
        $region87: #{tpu_custom_call.1} parent=83 // pred_region
          %s1106 = sand.u32 %s209, 1
          %s1107 = scalar_lea.sflag [#allocation6], %s1106
          %s1108 = sand.u32 %s209, 1
          %s1109 = smul.addr %s1108, 8
          %s1110 = scalar_lea.vmem [#allocation13], %s1109
          %1111 = dma.done %s1107, 128
        $region88: #{tpu_custom_call.1} parent=83 // pred_fallthru
          _
      $region84: #{tpu_custom_call.1} parent=5 // pred_fallthru
        _
    $region6: #{tpu_custom_call.1} parent=1 // loop_footer
      %s26 = sadd.s32 1, %s22
    $region7: #{tpu_custom_call.1} parent=1 // loop_footer_branch
      %21 = sbr.rel target = $region3
    $region8: #{tpu_custom_call.1} parent=1 // loop_exit
      _
    %1112 = vsyncpa [#allocation5], 1
    %s1113 = scalar_lea.sflag [#allocation5], 1
    %1114 = vsyncpa %s1113, 1
    %1115 = vsyncpa [#allocation8], 1
    %s1116 = scalar_lea.sflag [#allocation8], 1
    %1117 = vsyncpa %s1116, 1
    %1118 = vsyncpa [#allocation11], 1
    %s1119 = scalar_lea.sflag [#allocation11], 1
    %1120 = vsyncpa %s1119, 1
    %1121 = vsyncpa [#allocation6], 1
    %s1122 = scalar_lea.sflag [#allocation6], 1
    %1123 = vsyncpa %s1122, 1

</llo_original>
